<compile_context>
chip_gen: v5e
topology: v5e:2x2
jax: 0.10.0
libtpu: 0.0.40
codegen_flags: <defaults>
</compile_context>

<pallas_src>
import functools

import jax
import jax.numpy as jnp
from jax import lax
from jax.experimental import pallas as pl
from jax.experimental.pallas import tpu as pltpu


_CONTRACT_LAST = (((1,), (1,)), ((), ()))  # contract last dim of lhs with last dim of rhs


def _round_up(x, m):
    return ((x + m - 1) // m) * m


def _pad2(x, rows, cols):
    return jnp.pad(x, ((0, rows - x.shape[0]), (0, cols - x.shape[1])))


def _pick_k_tile(dp128, max_tile=512):
    """Largest multiple of 128 that divides dp128 and is <= max_tile."""
    best, t = 128, 128
    while t <= min(dp128, max_tile):
        if dp128 % t == 0:
            best = t
        t += 128
    return best


def _vmem_budget_bytes():
    """Generation-aware VMEM budget: ~3/4 of physical per-core capacity.

    v5e/v6e (128 MiB) -> ~96 MiB; v7x (64 MiB) -> ~48 MiB.  Falls back to a
    conservative 64 MiB capacity assumption if the query is unavailable.
    """
    try:
        cap = int(pltpu.get_tpu_info().vmem_capacity_bytes)
    except Exception:
        cap = 64 * 1024 * 1024
    return int(cap * 3 // 4), cap


# ----------------------------------------------------------------------------
# Kernel bodies
# ----------------------------------------------------------------------------
def _linear_nt_kernel(x_ref, w_ref, b_ref, y_ref, acc_ref):
    """One (row_tile, feat_tile) tile of Y = X @ W^T + b, K-tiled."""
    @pl.when(pl.program_id(2) == 0)
    def _():
        acc_ref[...] = jnp.zeros_like(acc_ref)

    acc_ref[...] += lax.dot_general(
        x_ref[...], w_ref[...], dimension_numbers=_CONTRACT_LAST,
        preferred_element_type=jnp.float32)

    @pl.when(pl.program_id(2) == pl.num_programs(2) - 1)
    def _():
        y_ref[...] = (acc_ref[...] + b_ref[...]).astype(y_ref.dtype)


def _matmul_nt_kernel(s_ref, d_ref, o_ref, acc_ref):
    """One (tm, tn) tile of O = S @ D^T, K-tiled."""
    @pl.when(pl.program_id(2) == 0)
    def _():
        acc_ref[...] = jnp.zeros_like(acc_ref)

    acc_ref[...] += lax.dot_general(
        s_ref[...], d_ref[...], dimension_numbers=_CONTRACT_LAST,
        preferred_element_type=jnp.float32)

    @pl.when(pl.program_id(2) == pl.num_programs(2) - 1)
    def _():
        o_ref[...] = acc_ref[...].astype(o_ref.dtype)


def _fused_small_kernel(src_ref, dst_ref, ws_ref, bs_ref, wd_ref, bd_ref, o_ref,
                        *, compute_dtype):
    """Grid-less single-block path for tiny problems (everything VMEM-resident)."""
    s = lax.dot_general(src_ref[...], ws_ref[...], dimension_numbers=_CONTRACT_LAST,
                        preferred_element_type=jnp.float32) + bs_ref[...]
    d = lax.dot_general(dst_ref[...], wd_ref[...], dimension_numbers=_CONTRACT_LAST,
                        preferred_element_type=jnp.float32) + bd_ref[...]
    o = lax.dot_general(s.astype(compute_dtype), d.astype(compute_dtype),
                        dimension_numbers=_CONTRACT_LAST,
                        preferred_element_type=jnp.float32)
    o_ref[...] = o.astype(o_ref.dtype)


# ----------------------------------------------------------------------------
# pallas_call wrappers
# ----------------------------------------------------------------------------
def _linear_nt(x, w, b, *, row_tile, feat_tile, k_tile, out_dtype, vmem_limit):
    """Y = X @ W^T + b.  x:(N,K) w:(F,K) b:(1,F) -> (N,F). All dims tile-aligned."""
    N, K = x.shape
    F, _ = w.shape
    grid = (N // row_tile, F // feat_tile, K // k_tile)
    return pl.pallas_call(
        _linear_nt_kernel,
        out_shape=jax.ShapeDtypeStruct((N, F), out_dtype),
        grid=grid,
        in_specs=[
            pl.BlockSpec((row_tile, k_tile), lambda i, j, k: (i, k)),   # X tile
            pl.BlockSpec((feat_tile, k_tile), lambda i, j, k: (j, k)),  # W tile
            pl.BlockSpec((1, feat_tile), lambda i, j, k: (0, j)),       # bias tile
        ],
        out_specs=pl.BlockSpec((row_tile, feat_tile), lambda i, j, k: (i, j)),
        scratch_shapes=[pltpu.VMEM((row_tile, feat_tile), jnp.float32)],
        compiler_params=pltpu.CompilerParams(
            dimension_semantics=("parallel", "parallel", "arbitrary"),
            vmem_limit_bytes=vmem_limit),
    )(x, w, b)


def _matmul_nt(s, d, *, tm, tn, tk, out_dtype, vmem_limit):
    """O = S @ D^T.  s:(B,K) d:(L,K) -> (B,L). All dims tile-aligned."""
    B, K = s.shape
    L, _ = d.shape
    grid = (B // tm, L // tn, K // tk)
    return pl.pallas_call(
        _matmul_nt_kernel,
        out_shape=jax.ShapeDtypeStruct((B, L), out_dtype),
        grid=grid,
        in_specs=[
            pl.BlockSpec((tm, tk), lambda i, j, k: (i, k)),
            pl.BlockSpec((tn, tk), lambda i, j, k: (j, k)),
        ],
        out_specs=pl.BlockSpec((tm, tn), lambda i, j, k: (i, j)),
        scratch_shapes=[pltpu.VMEM((tm, tn), jnp.float32)],
        compiler_params=pltpu.CompilerParams(
            dimension_semantics=("parallel", "parallel", "arbitrary"),
            vmem_limit_bytes=vmem_limit),
    )(s, d)


def node_co_predictor(src, dst, ws, bs, wd, bd, *,
                      tm=None, tn=None, tk=None,
                      compute_dtype=jnp.bfloat16,
                      out_dtype=jnp.float32,
                      allow_fused_small=True):
    """Pallas forward of NodeCoPredictor.  src:(B,D) dst:(L,D) -> (B,L)."""
    B, D = src.shape
    L, D2 = dst.shape
    assert D == D2 and ws.shape == (D, D) and wd.shape == (D, D)
    assert bs.shape == (D,) and bd.shape == (D,)

    vmem_limit, vmem_cap = _vmem_budget_bytes()

    # Generation-aware tile defaults: larger N-tile when VMEM is 128 MiB.
    if tm is None:
        tm = 256
    if tn is None:
        tn = 512 if vmem_cap >= 100 * 1024 * 1024 else 256

    Dp128 = _round_up(D, 128)
    if tk is None:
        tk = _pick_k_tile(Dp128, max_tile=512)
        Dp = Dp128
    else:
        tk = max(128, _round_up(min(tk, Dp128), 128))
        Dp = _round_up(Dp128, tk)

    tm = min(tm, _round_up(B, 128))
    tn = min(tn, _round_up(L, 128))
    Bp = _round_up(B, tm)
    Lp = _round_up(L, tn)

    # Pad + cast exactly once (zero padding is exact: padded D columns of the
    # projections are zero, padded B/L rows are sliced off at the end).
    src_p = _pad2(src, Bp, Dp).astype(compute_dtype)
    dst_p = _pad2(dst, Lp, Dp).astype(compute_dtype)
    ws_p = _pad2(ws, Dp, Dp).astype(compute_dtype)
    wd_p = _pad2(wd, Dp, Dp).astype(compute_dtype)
    bs_p = _pad2(bs.reshape(1, D), 1, Dp).astype(jnp.float32)
    bd_p = _pad2(bd.reshape(1, D), 1, Dp).astype(jnp.float32)

    csize = jnp.dtype(compute_dtype).itemsize
    osize = jnp.dtype(out_dtype).itemsize

    # ---- Small-problem fast path: single output tile, everything VMEM-resident.
    fused_bytes = ((2 * Dp * Dp + Bp * Dp + Lp * Dp) * csize     # weights + acts
                   + (Bp * Dp + Lp * Dp) * 4                     # f32 intermediates
                   + Bp * Lp * (4 + osize)                       # f32 result + out
                   + 2 * Dp * 4)                                 # biases
    if allow_fused_small and Bp == tm and Lp == tn and fused_bytes <= vmem_limit // 2:
        out_p = pl.pallas_call(
            functools.partial(_fused_small_kernel, compute_dtype=compute_dtype),
            out_shape=jax.ShapeDtypeStruct((Bp, Lp), out_dtype),
            in_specs=[pl.BlockSpec(memory_space=pltpu.MemorySpace.VMEM)] * 6,
            out_specs=pl.BlockSpec(memory_space=pltpu.MemorySpace.VMEM),
            compiler_params=pltpu.CompilerParams(vmem_limit_bytes=vmem_limit),
        )(src_p, dst_p, ws_p, bs_p, wd_p, bd_p)
        return out_p[:B, :L]

    # ---- Tiled path: hoisted projections (each computed exactly once), then GEMM.
    s_p = _linear_nt(src_p, ws_p, bs_p, row_tile=tm, feat_tile=tk, k_tile=tk,
                     out_dtype=compute_dtype, vmem_limit=vmem_limit)
    d_p = _linear_nt(dst_p, wd_p, bd_p, row_tile=tn, feat_tile=tk, k_tile=tk,
                     out_dtype=compute_dtype, vmem_limit=vmem_limit)
    out_p = _matmul_nt(s_p, d_p, tm=tm, tn=tn, tk=tk,
                       out_dtype=out_dtype, vmem_limit=vmem_limit)
    return out_p[:B, :L]


# ----------------------------------------------------------------------------
# Self-test
# ----------------------------------------------------------------------------
if __name__ == "__main__":
    def reference(src, dst, ws, bs, wd, bd):
        hi = lax.Precision.HIGHEST
        s = jnp.dot(src, ws.T, precision=hi) + bs
        d = jnp.dot(dst, wd.T, precision=hi) + bd
        return jnp.dot(s, d.T, precision=hi)

    def make_inputs(key, B, L, D):
        k = jax.random.split(key, 6)
        bound = float(D) ** -0.5   # torch.nn.Linear default init range
        src = jax.random.normal(k[0], (B, D), jnp.float32)
        dst = jax.random.normal(k[1], (L, D), jnp.float32)
        ws = jax.random.uniform(k[2], (D, D), jnp.float32, -bound, bound)
        bs = jax.random.uniform(k[3], (D,), jnp.float32, -bound, bound)
        wd = jax.random.uniform(k[4], (D, D), jnp.float32, -bound, bound)
        bd = jax.random.uniform(k[5], (D,), jnp.float32, -bound, bound)
        return src, dst, ws, bs, wd, bd

    root = jax.random.PRNGKey(0)
    k1, k2 = jax.random.split(root)

    # --- Case 1: tiny shapes -> grid-less fused single-block path. ---
    B, L, D = 8, 16, 32
    args = make_inputs(k1, B, L, D)
    ref = reference(*args)

    out = jax.block_until_ready(
        node_co_predictor(*args, compute_dtype=jnp.float32))
    assert out.shape == (B, L)
    assert jnp.allclose(out, ref, atol=2e-2, rtol=2e-2), "fused f32 mismatch"

    out = jax.block_until_ready(node_co_predictor(*args))   # bf16 production path
    assert out.shape == (B, L)
    assert jnp.allclose(out, ref, atol=2.5e-1, rtol=5e-2), "fused bf16 mismatch"

    # --- Case 2: multi-tile shapes -> hoisted-projection tiled path (K-tiled). ---
    B, L, D = 200, 300, 160
    args = make_inputs(k2, B, L, D)
    ref = reference(*args)

    out = jax.block_until_ready(
        node_co_predictor(*args, tm=128, tn=128, tk=128, compute_dtype=jnp.float32))
    assert out.shape == (B, L)
    assert jnp.allclose(out, ref, atol=2e-2, rtol=2e-2), "tiled f32 mismatch"

    out = jax.block_until_ready(
        node_co_predictor(*args, tm=128, tn=128, tk=128))    # bf16 production path
    assert out.shape == (B, L)
    assert jnp.allclose(out, ref, atol=2.5e-1, rtol=5e-2), "tiled bf16 mismatch"

    print("KERNEL_OK")
</pallas_src>

<mosaic_0001>
module attributes {stable_mosaic.version = 11 : i64} {
  func.func @_fused_small_kernel(%arg0: memref<128x128xf32, #tpu.memory_space<vmem>>, %arg1: memref<128x128xf32, #tpu.memory_space<vmem>>, %arg2: memref<128x128xf32, #tpu.memory_space<vmem>>, %arg3: memref<1x128xf32, #tpu.memory_space<vmem>>, %arg4: memref<128x128xf32, #tpu.memory_space<vmem>>, %arg5: memref<1x128xf32, #tpu.memory_space<vmem>>, %arg6: memref<128x128xf32, #tpu.memory_space<vmem>>) attributes {dimension_semantics = [], scalar_prefetch = 0 : i64, scratch_operands = 0 : i64, tpu.core_type = #tpu.core_type<tc>} {
    %c0 = arith.constant 0 : index
    %c0_0 = arith.constant 0 : index
    %0 = vector.load %arg0[%c0, %c0_0] : memref<128x128xf32, #tpu.memory_space<vmem>>, vector<128x128xf32>
    %c0_1 = arith.constant 0 : index
    %c0_2 = arith.constant 0 : index
    %1 = vector.load %arg2[%c0_1, %c0_2] : memref<128x128xf32, #tpu.memory_space<vmem>>, vector<128x128xf32>
    %cst = arith.constant dense<0.000000e+00> : vector<128x128xf32>
    %2 = tpu.matmul %0, %1, %cst {dimension_numbers = #tpu.dot_dimension_numbers<[1], [1], [0], [0], [0, 0, 1, 0], [], []>} : vector<128x128xf32>, vector<128x128xf32>, vector<128x128xf32> -> vector<128x128xf32>
    %c0_3 = arith.constant 0 : index
    %c0_4 = arith.constant 0 : index
    %3 = vector.load %arg3[%c0_3, %c0_4] : memref<1x128xf32, #tpu.memory_space<vmem>>, vector<1x128xf32>
    %4 = vector.broadcast %3 : vector<1x128xf32> to vector<128x128xf32>
    %5 = arith.addf %2, %4 : vector<128x128xf32>
    %c0_5 = arith.constant 0 : index
    %c0_6 = arith.constant 0 : index
    %6 = vector.load %arg1[%c0_5, %c0_6] : memref<128x128xf32, #tpu.memory_space<vmem>>, vector<128x128xf32>
    %c0_7 = arith.constant 0 : index
    %c0_8 = arith.constant 0 : index
    %7 = vector.load %arg4[%c0_7, %c0_8] : memref<128x128xf32, #tpu.memory_space<vmem>>, vector<128x128xf32>
    %cst_9 = arith.constant dense<0.000000e+00> : vector<128x128xf32>
    %8 = tpu.matmul %6, %7, %cst_9 {dimension_numbers = #tpu.dot_dimension_numbers<[1], [1], [0], [0], [0, 0, 1, 0], [], []>} : vector<128x128xf32>, vector<128x128xf32>, vector<128x128xf32> -> vector<128x128xf32>
    %c0_10 = arith.constant 0 : index
    %c0_11 = arith.constant 0 : index
    %9 = vector.load %arg5[%c0_10, %c0_11] : memref<1x128xf32, #tpu.memory_space<vmem>>, vector<1x128xf32>
    %10 = vector.broadcast %9 : vector<1x128xf32> to vector<128x128xf32>
    %11 = arith.addf %8, %10 : vector<128x128xf32>
    %cst_12 = arith.constant dense<0.000000e+00> : vector<128x128xf32>
    %12 = tpu.matmul %5, %11, %cst_12 {dimension_numbers = #tpu.dot_dimension_numbers<[1], [1], [0], [0], [0, 0, 1, 0], [], []>} : vector<128x128xf32>, vector<128x128xf32>, vector<128x128xf32> -> vector<128x128xf32>
    %c0_13 = arith.constant 0 : index
    %c0_14 = arith.constant 0 : index
    %13 = vector.load %arg6[%c0_13, %c0_14] : memref<128x128xf32, #tpu.memory_space<vmem>>, vector<128x128xf32>
    tpu.vector_store %arg6[%c0_13, %c0_14], %12 {strides = array<i32>} : memref<128x128xf32, #tpu.memory_space<vmem>>, vector<128x128xf32>,
    return
  }
}

</mosaic_0001>

<llo_original>
// kernel: tpu_custom_call.1
$region0: #{tpu_custom_call.1}
  #allocation0 [shape = 'u32[]', space=smem, size = 0x4, offset = 0x4, fixed_abs, tag = 'smem constant byte address 0x4 - core index']
  #allocation1 [shape = 'u32[72,128]{1,0:T(1,128)}', space=vmem, size = 0x9000, scoped, tag = 'internal scratch']
  %s0 = inlined_call_operand.hbm [shape: f32[128,128], index: 0, kind: input, shape index: {}]
  %s1 = inlined_call_operand.hbm [shape: f32[128,128], index: 1, kind: input, shape index: {}]
  %s2 = inlined_call_operand.hbm [shape: f32[128,128], index: 2, kind: input, shape index: {}]
  %s3 = inlined_call_operand.vmem [shape: f32[1,128], index: 3, kind: input, shape index: {}]
  %s4 = inlined_call_operand.hbm [shape: f32[128,128], index: 4, kind: input, shape index: {}]
  %s5 = inlined_call_operand.vmem [shape: f32[1,128], index: 5, kind: input, shape index: {}]
  %s6 = inlined_call_operand.hbm [shape: f32[128,128], index: 6, kind: output, shape index: {}]
  %s7 = sld [smem:[#allocation0]]
  $region50: #{tpu_custom_call.1} parent=0
    _
  %s9 = ssub.s32 1, %s7
  %s10 = scalar_select 0, %s9, %s7
  $region1: #{tpu_custom_call.1} parent=0
    #allocation2 [shape = 'u8[65536]{0}', space=vmem, size = 0x10000, scoped, tag = 'input window, operand 0, single buffered']
    #allocation3 [shape = 's32[1]{0}', space=sflag, size = 0x4, scoped, tag = 'scoped memory for tpu_custom_call.1']
    #allocation4 [shape = 's32[1]{0}', space=sflag, size = 0x4, scoped, tag = 'scoped memory for tpu_custom_call.1']
    #allocation5 [shape = 'u8[65536]{0}', space=vmem, size = 0x10000, scoped, tag = 'input window, operand 1, single buffered']
    #allocation6 [shape = 's32[1]{0}', space=sflag, size = 0x4, scoped, tag = 'scoped memory for tpu_custom_call.1']
    #allocation7 [shape = 'u8[65536]{0}', space=vmem, size = 0x10000, scoped, tag = 'input window, operand 2, single buffered']
    #allocation8 [shape = 'u8[65536]{0}', space=vmem, size = 0x10000, scoped, tag = 'input window, operand 4, single buffered']
    #allocation9 [shape = 's32[1]{0}', space=sflag, size = 0x4, scoped, tag = 'scoped memory for tpu_custom_call.1']
    #allocation10 [shape = 'u8[65536]{0}', space=vmem, size = 0x10000, scoped, tag = 'output window, operand 0, single buffered']
    %11 = vsyncpa [#allocation3], 0
    %12 = vsyncpa [#allocation6], 0
    %13 = vsyncpa [#allocation9], 0
    %14 = vsyncpa [#allocation4], 0
    // Predicated region
    $region2: #{tpu_custom_call.1} parent=1 // pred_check
      _
    $region3: #{tpu_custom_call.1} parent=1 // pred_check_branch
      %16 = sbr.rel (0) target = $region5
    $region4: #{tpu_custom_call.1} parent=1 // pred_region
      %18 = vsyncadd [#allocation3], 0
      %s19 = sshll.u32 %s0, 4
      %s20 = int_to_ptr.hbm [resolvable:$true] %s19
      %s21 = sshll.u32 [#allocation2], 4
      %s22 = int_to_ptr.vmem [resolvable:$true] %s21
      %27 = dma.hbm_to_vmem [thread:$0]  %s20, 2048, %s22, [#allocation3], 128, 128, 8
    $region5: #{tpu_custom_call.1} parent=1 // pred_fallthru
      _
    // Predicated region
    $region6: #{tpu_custom_call.1} parent=1 // pred_check
      _
    $region7: #{tpu_custom_call.1} parent=1 // pred_check_branch
      %29 = sbr.rel (0) target = $region9
    $region8: #{tpu_custom_call.1} parent=1 // pred_region
      %31 = vsyncadd [#allocation6], 0
      %s32 = sshll.u32 %s1, 4
      %s33 = int_to_ptr.hbm [resolvable:$true] %s32
      %s34 = sshll.u32 [#allocation5], 4
      %s35 = int_to_ptr.vmem [resolvable:$true] %s34
      %40 = dma.hbm_to_vmem [thread:$0]  %s33, 2048, %s35, [#allocation6], 128, 128, 8
    $region9: #{tpu_custom_call.1} parent=1 // pred_fallthru
      _
    // Predicated region
    $region10: #{tpu_custom_call.1} parent=1 // pred_check
      _
    $region11: #{tpu_custom_call.1} parent=1 // pred_check_branch
      %42 = sbr.rel (0) target = $region13
    $region12: #{tpu_custom_call.1} parent=1 // pred_region
      %44 = vsyncadd [#allocation6], 0
      %s45 = sshll.u32 %s2, 4
      %s46 = int_to_ptr.hbm [resolvable:$true] %s45
      %s47 = sshll.u32 [#allocation7], 4
      %s48 = int_to_ptr.vmem [resolvable:$true] %s47
      %53 = dma.hbm_to_vmem [thread:$0]  %s46, 2048, %s48, [#allocation6], 128, 128, 8
    $region13: #{tpu_custom_call.1} parent=1 // pred_fallthru
      _
    // Predicated region
    $region14: #{tpu_custom_call.1} parent=1 // pred_check
      _
    $region15: #{tpu_custom_call.1} parent=1 // pred_check_branch
      %55 = sbr.rel (0) target = $region17
    $region16: #{tpu_custom_call.1} parent=1 // pred_region
      _
    $region17: #{tpu_custom_call.1} parent=1 // pred_fallthru
      _
    // Predicated region
    $region18: #{tpu_custom_call.1} parent=1 // pred_check
      _
    $region19: #{tpu_custom_call.1} parent=1 // pred_check_branch
      %57 = sbr.rel (0) target = $region21
    $region20: #{tpu_custom_call.1} parent=1 // pred_region
      %59 = vsyncadd [#allocation9], 0
      %s60 = sshll.u32 %s4, 4
      %s61 = int_to_ptr.hbm [resolvable:$true] %s60
      %s62 = sshll.u32 [#allocation8], 4
      %s63 = int_to_ptr.vmem [resolvable:$true] %s62
      %68 = dma.hbm_to_vmem [thread:$0]  %s61, 2048, %s63, [#allocation9], 128, 128, 8
    $region21: #{tpu_custom_call.1} parent=1 // pred_fallthru
      _
    // Predicated region
    $region22: #{tpu_custom_call.1} parent=1 // pred_check
      _
    $region23: #{tpu_custom_call.1} parent=1 // pred_check_branch
      %70 = sbr.rel (0) target = $region25
    $region24: #{tpu_custom_call.1} parent=1 // pred_region
      _
    $region25: #{tpu_custom_call.1} parent=1 // pred_fallthru
      _
    // Predicated region
    $region26: #{tpu_custom_call.1} parent=1 // pred_check
      _
    $region27: #{tpu_custom_call.1} parent=1 // pred_check_branch
      %72 = sbr.rel (0) target = $region29
    $region28: #{tpu_custom_call.1} parent=1 // pred_region
      %74 = dma.done [#allocation3], 2048
    $region29: #{tpu_custom_call.1} parent=1 // pred_fallthru
      _
    // Predicated region
    $region30: #{tpu_custom_call.1} parent=1 // pred_check
      _
    $region31: #{tpu_custom_call.1} parent=1 // pred_check_branch
      %76 = sbr.rel (0) target = $region33
    $region32: #{tpu_custom_call.1} parent=1 // pred_region
      %78 = dma.done [#allocation6], 2048
    $region33: #{tpu_custom_call.1} parent=1 // pred_fallthru
      _
    // Predicated region
    $region34: #{tpu_custom_call.1} parent=1 // pred_check
      _
    $region35: #{tpu_custom_call.1} parent=1 // pred_check_branch
      %80 = sbr.rel (0) target = $region37
    $region36: #{tpu_custom_call.1} parent=1 // pred_region
      %82 = dma.done [#allocation6], 2048
    $region37: #{tpu_custom_call.1} parent=1 // pred_fallthru
      _
    // Predicated region
    $region38: #{tpu_custom_call.1} parent=1 // pred_check
      _
    $region39: #{tpu_custom_call.1} parent=1 // pred_check_branch
      %84 = sbr.rel (0) target = $region41
    $region40: #{tpu_custom_call.1} parent=1 // pred_region
      %86 = dma.done [#allocation9], 2048
    $region41: #{tpu_custom_call.1} parent=1 // pred_fallthru
      _
    %v87 = vld [vmem:[#allocation2] sm:$0xff]
    %v88 = vld [vmem:[#allocation2 + $0x8] sm:$0xff]
    %v89 = vld [vmem:[#allocation2 + $0x10] sm:$0xff]
    %v90 = vld [vmem:[#allocation2 + $0x18] sm:$0xff]
    %v91 = vld [vmem:[#allocation2 + $0x20] sm:$0xff]
    %v92 = vld [vmem:[#allocation2 + $0x28] sm:$0xff]
    %v93 = vld [vmem:[#allocation2 + $0x30] sm:$0xff]
    %v94 = vld [vmem:[#allocation2 + $0x38] sm:$0xff]
    %v95 = vld [vmem:[#allocation2 + $0x40] sm:$0xff]
    %v96 = vld [vmem:[#allocation2 + $0x48] sm:$0xff]
    %v97 = vld [vmem:[#allocation2 + $0x50] sm:$0xff]
    %v98 = vld [vmem:[#allocation2 + $0x58] sm:$0xff]
    %v99 = vld [vmem:[#allocation2 + $0x60] sm:$0xff]
    %v100 = vld [vmem:[#allocation2 + $0x68] sm:$0xff]
    %v101 = vld [vmem:[#allocation2 + $0x70] sm:$0xff]
    %v102 = vld [vmem:[#allocation2 + $0x78] sm:$0xff]
    %v103 = vld [vmem:[#allocation7] sm:$0xff]
    %v104 = vld [vmem:[#allocation7 + $0x8] sm:$0xff]
    %v105 = vld [vmem:[#allocation7 + $0x10] sm:$0xff]
    %v106 = vld [vmem:[#allocation7 + $0x18] sm:$0xff]
    %v107 = vld [vmem:[#allocation7 + $0x20] sm:$0xff]
    %v108 = vld [vmem:[#allocation7 + $0x28] sm:$0xff]
    %v109 = vld [vmem:[#allocation7 + $0x30] sm:$0xff]
    %v110 = vld [vmem:[#allocation7 + $0x38] sm:$0xff]
    %v111 = vld [vmem:[#allocation7 + $0x40] sm:$0xff]
    %v112 = vld [vmem:[#allocation7 + $0x48] sm:$0xff]
    %v113 = vld [vmem:[#allocation7 + $0x50] sm:$0xff]
    %v114 = vld [vmem:[#allocation7 + $0x58] sm:$0xff]
    %v115 = vld [vmem:[#allocation7 + $0x60] sm:$0xff]
    %v116 = vld [vmem:[#allocation7 + $0x68] sm:$0xff]
    %v117 = vld [vmem:[#allocation7 + $0x70] sm:$0xff]
    %v118 = vld [vmem:[#allocation7 + $0x78] sm:$0xff]
    %v119 = vld [vmem:[%s3] sm:$0x1]
    %v121 = vperm.slane %v119, 0
    %123 = vmatpush.xpose.msra.mxu0 %v118
    %124 = vmatpush.xpose.msra.mxu0 %v117
    %125 = vmatpush.xpose.msra.mxu0 %v116
    %126 = vmatpush.xpose.msra.mxu0 %v115
    %127 = vmatpush.xpose.msra.mxu0 %v114
    %128 = vmatpush.xpose.msra.mxu0 %v113
    %129 = vmatpush.xpose.msra.mxu0 %v112
    %130 = vmatpush.xpose.msra.mxu0 %v111
    %131 = vmatpush.xpose.msra.mxu0 %v110
    %132 = vmatpush.xpose.msra.mxu0 %v109
    %133 = vmatpush.xpose.msra.mxu0 %v108
    %134 = vmatpush.xpose.msra.mxu0 %v107
    %135 = vmatpush.xpose.msra.mxu0 %v106
    %136 = vmatpush.xpose.msra.mxu0 %v105
    %137 = vmatpush.xpose.msra.mxu0 %v104
    %138 = vmatpush.xpose.msra.mxu0 %v103
    %139 = vmatmul.f32.gmra.mxu0 %v87
    %v140 = vpop.f32.mrf.mxu0
    %v141 = vadd.f32 %v121, %v140
    %142 = vmatmul.f32.gmra.mxu0 %v88
    %v143 = vpop.f32.mrf.mxu0
    %v144 = vadd.f32 %v121, %v143
    %145 = vmatmul.f32.gmra.mxu0 %v89
    %v146 = vpop.f32.mrf.mxu0
    %v147 = vadd.f32 %v121, %v146
    %148 = vmatmul.f32.gmra.mxu0 %v90
    %v149 = vpop.f32.mrf.mxu0
    %v150 = vadd.f32 %v121, %v149
    %151 = vmatmul.f32.gmra.mxu0 %v91
    %v152 = vpop.f32.mrf.mxu0
    %v153 = vadd.f32 %v121, %v152
    %154 = vmatmul.f32.gmra.mxu0 %v92
    %v155 = vpop.f32.mrf.mxu0
    %v156 = vadd.f32 %v121, %v155
    %157 = vmatmul.f32.gmra.mxu0 %v93
    %v158 = vpop.f32.mrf.mxu0
    %v159 = vadd.f32 %v121, %v158
    %160 = vmatmul.f32.gmra.mxu0 %v94
    %v161 = vpop.f32.mrf.mxu0
    %v162 = vadd.f32 %v121, %v161
    %163 = vmatmul.f32.gmra.mxu0 %v95
    %v164 = vpop.f32.mrf.mxu0
    %v165 = vadd.f32 %v121, %v164
    %166 = vmatmul.f32.gmra.mxu0 %v96
    %v167 = vpop.f32.mrf.mxu0
    %v168 = vadd.f32 %v121, %v167
    %169 = vmatmul.f32.gmra.mxu0 %v97
    %v170 = vpop.f32.mrf.mxu0
    %v171 = vadd.f32 %v121, %v170
    %172 = vmatmul.f32.gmra.mxu0 %v98
    %v173 = vpop.f32.mrf.mxu0
    %v174 = vadd.f32 %v121, %v173
    %175 = vmatmul.f32.gmra.mxu0 %v99
    %v176 = vpop.f32.mrf.mxu0
    %v177 = vadd.f32 %v121, %v176
    %178 = vmatmul.f32.gmra.mxu0 %v100
    %v179 = vpop.f32.mrf.mxu0
    %v180 = vadd.f32 %v121, %v179
    %181 = vmatmul.f32.gmra.mxu0 %v101
    %v182 = vpop.f32.mrf.mxu0
    %v183 = vadd.f32 %v121, %v182
    %184 = vmatmul.f32.gmra.mxu0 %v102
    %v185 = vpop.f32.mrf.mxu0
    %v186 = vadd.f32 %v121, %v185
    %187 = vdwg.mxu0
    %v188 = vld [vmem:[#allocation5] sm:$0xff]
    %v189 = vld [vmem:[#allocation5 + $0x8] sm:$0xff]
    %v190 = vld [vmem:[#allocation5 + $0x10] sm:$0xff]
    %v191 = vld [vmem:[#allocation5 + $0x18] sm:$0xff]
    %v192 = vld [vmem:[#allocation5 + $0x20] sm:$0xff]
    %v193 = vld [vmem:[#allocation5 + $0x28] sm:$0xff]
    %v194 = vld [vmem:[#allocation5 + $0x30] sm:$0xff]
    %v195 = vld [vmem:[#allocation5 + $0x38] sm:$0xff]
    %v196 = vld [vmem:[#allocation5 + $0x40] sm:$0xff]
    %v197 = vld [vmem:[#allocation5 + $0x48] sm:$0xff]
    %v198 = vld [vmem:[#allocation5 + $0x50] sm:$0xff]
    %v199 = vld [vmem:[#allocation5 + $0x58] sm:$0xff]
    %v200 = vld [vmem:[#allocation5 + $0x60] sm:$0xff]
    %v201 = vld [vmem:[#allocation5 + $0x68] sm:$0xff]
    %v202 = vld [vmem:[#allocation5 + $0x70] sm:$0xff]
    %v203 = vld [vmem:[#allocation5 + $0x78] sm:$0xff]
    %v204 = vld [vmem:[#allocation8] sm:$0xff]
    %v205 = vld [vmem:[#allocation8 + $0x8] sm:$0xff]
    %v206 = vld [vmem:[#allocation8 + $0x10] sm:$0xff]
    %v207 = vld [vmem:[#allocation8 + $0x18] sm:$0xff]
    %v208 = vld [vmem:[#allocation8 + $0x20] sm:$0xff]
    %v209 = vld [vmem:[#allocation8 + $0x28] sm:$0xff]
    %v210 = vld [vmem:[#allocation8 + $0x30] sm:$0xff]
    %v211 = vld [vmem:[#allocation8 + $0x38] sm:$0xff]
    %v212 = vld [vmem:[#allocation8 + $0x40] sm:$0xff]
    %v213 = vld [vmem:[#allocation8 + $0x48] sm:$0xff]
    %v214 = vld [vmem:[#allocation8 + $0x50] sm:$0xff]
    %v215 = vld [vmem:[#allocation8 + $0x58] sm:$0xff]
    %v216 = vld [vmem:[#allocation8 + $0x60] sm:$0xff]
    %v217 = vld [vmem:[#allocation8 + $0x68] sm:$0xff]
    %v218 = vld [vmem:[#allocation8 + $0x70] sm:$0xff]
    %v219 = vld [vmem:[#allocation8 + $0x78] sm:$0xff]
    %v220 = vld [vmem:[%s5] sm:$0x1]
    %v222 = vperm.slane %v220, 0
    %224 = vmatpush.xpose.msra.mxu0 %v219
    %225 = vmatpush.xpose.msra.mxu0 %v218
    %226 = vmatpush.xpose.msra.mxu0 %v217
    %227 = vmatpush.xpose.msra.mxu0 %v216
    %228 = vmatpush.xpose.msra.mxu0 %v215
    %229 = vmatpush.xpose.msra.mxu0 %v214
    %230 = vmatpush.xpose.msra.mxu0 %v213
    %231 = vmatpush.xpose.msra.mxu0 %v212
    %232 = vmatpush.xpose.msra.mxu0 %v211
    %233 = vmatpush.xpose.msra.mxu0 %v210
    %234 = vmatpush.xpose.msra.mxu0 %v209
    %235 = vmatpush.xpose.msra.mxu0 %v208
    %236 = vmatpush.xpose.msra.mxu0 %v207
    %237 = vmatpush.xpose.msra.mxu0 %v206
    %238 = vmatpush.xpose.msra.mxu0 %v205
    %239 = vmatpush.xpose.msra.mxu0 %v204
    %240 = vmatmul.f32.gmra.mxu0 %v188
    %v241 = vpop.f32.mrf.mxu0
    %v242 = vadd.f32 %v222, %v241
    %243 = vmatmul.f32.gmra.mxu0 %v189
    %v244 = vpop.f32.mrf.mxu0
    %v245 = vadd.f32 %v222, %v244
    %246 = vmatmul.f32.gmra.mxu0 %v190
    %v247 = vpop.f32.mrf.mxu0
    %v248 = vadd.f32 %v222, %v247
    %249 = vmatmul.f32.gmra.mxu0 %v191
    %v250 = vpop.f32.mrf.mxu0
    %v251 = vadd.f32 %v222, %v250
    %252 = vmatmul.f32.gmra.mxu0 %v192
    %v253 = vpop.f32.mrf.mxu0
    %v254 = vadd.f32 %v222, %v253
    %255 = vmatmul.f32.gmra.mxu0 %v193
    %v256 = vpop.f32.mrf.mxu0
    %v257 = vadd.f32 %v222, %v256
    %258 = vmatmul.f32.gmra.mxu0 %v194
    %v259 = vpop.f32.mrf.mxu0
    %v260 = vadd.f32 %v222, %v259
    %261 = vmatmul.f32.gmra.mxu0 %v195
    %v262 = vpop.f32.mrf.mxu0
    %v263 = vadd.f32 %v222, %v262
    %264 = vmatmul.f32.gmra.mxu0 %v196
    %v265 = vpop.f32.mrf.mxu0
    %v266 = vadd.f32 %v222, %v265
    %267 = vmatmul.f32.gmra.mxu0 %v197
    %v268 = vpop.f32.mrf.mxu0
    %v269 = vadd.f32 %v222, %v268
    %270 = vmatmul.f32.gmra.mxu0 %v198
    %v271 = vpop.f32.mrf.mxu0
    %v272 = vadd.f32 %v222, %v271
    %273 = vmatmul.f32.gmra.mxu0 %v199
    %v274 = vpop.f32.mrf.mxu0
    %v275 = vadd.f32 %v222, %v274
    %276 = vmatmul.f32.gmra.mxu0 %v200
    %v277 = vpop.f32.mrf.mxu0
    %v278 = vadd.f32 %v222, %v277
    %279 = vmatmul.f32.gmra.mxu0 %v201
    %v280 = vpop.f32.mrf.mxu0
    %v281 = vadd.f32 %v222, %v280
    %282 = vmatmul.f32.gmra.mxu0 %v202
    %v283 = vpop.f32.mrf.mxu0
    %v284 = vadd.f32 %v222, %v283
    %285 = vmatmul.f32.gmra.mxu0 %v203
    %v286 = vpop.f32.mrf.mxu0
    %v287 = vadd.f32 %v222, %v286
    %288 = vdwg.mxu0
    %289 = vmatpush.xpose.msra.mxu0 %v287
    %290 = vmatpush.xpose.msra.mxu0 %v284
    %291 = vmatpush.xpose.msra.mxu0 %v281
    %292 = vmatpush.xpose.msra.mxu0 %v278
    %293 = vmatpush.xpose.msra.mxu0 %v275
    %294 = vmatpush.xpose.msra.mxu0 %v272
    %295 = vmatpush.xpose.msra.mxu0 %v269
    %296 = vmatpush.xpose.msra.mxu0 %v266
    %297 = vmatpush.xpose.msra.mxu0 %v263
    %298 = vmatpush.xpose.msra.mxu0 %v260
    %299 = vmatpush.xpose.msra.mxu0 %v257
    %300 = vmatpush.xpose.msra.mxu0 %v254
    %301 = vmatpush.xpose.msra.mxu0 %v251
    %302 = vmatpush.xpose.msra.mxu0 %v248
    %303 = vmatpush.xpose.msra.mxu0 %v245
    %304 = vmatpush.xpose.msra.mxu0 %v242
    %305 = vmatmul.f32.gmra.mxu0 %v141
    %v306 = vpop.f32.mrf.mxu0
    %v307 = vadd.f32 0.0, %v306
    %308 = vmatmul.f32.gmra.mxu0 %v144
    %v309 = vpop.f32.mrf.mxu0
    %v310 = vadd.f32 0.0, %v309
    %311 = vmatmul.f32.gmra.mxu0 %v147
    %v312 = vpop.f32.mrf.mxu0
    %v313 = vadd.f32 0.0, %v312
    %314 = vmatmul.f32.gmra.mxu0 %v150
    %v315 = vpop.f32.mrf.mxu0
    %v316 = vadd.f32 0.0, %v315
    %317 = vmatmul.f32.gmra.mxu0 %v153
    %v318 = vpop.f32.mrf.mxu0
    %v319 = vadd.f32 0.0, %v318
    %320 = vmatmul.f32.gmra.mxu0 %v156
    %v321 = vpop.f32.mrf.mxu0
    %v322 = vadd.f32 0.0, %v321
    %323 = vmatmul.f32.gmra.mxu0 %v159
    %v324 = vpop.f32.mrf.mxu0
    %v325 = vadd.f32 0.0, %v324
    %326 = vmatmul.f32.gmra.mxu0 %v162
    %v327 = vpop.f32.mrf.mxu0
    %v328 = vadd.f32 0.0, %v327
    %329 = vmatmul.f32.gmra.mxu0 %v165
    %v330 = vpop.f32.mrf.mxu0
    %v331 = vadd.f32 0.0, %v330
    %332 = vmatmul.f32.gmra.mxu0 %v168
    %v333 = vpop.f32.mrf.mxu0
    %v334 = vadd.f32 0.0, %v333
    %335 = vmatmul.f32.gmra.mxu0 %v171
    %v336 = vpop.f32.mrf.mxu0
    %v337 = vadd.f32 0.0, %v336
    %338 = vmatmul.f32.gmra.mxu0 %v174
    %v339 = vpop.f32.mrf.mxu0
    %v340 = vadd.f32 0.0, %v339
    %341 = vmatmul.f32.gmra.mxu0 %v177
    %v342 = vpop.f32.mrf.mxu0
    %v343 = vadd.f32 0.0, %v342
    %344 = vmatmul.f32.gmra.mxu0 %v180
    %v345 = vpop.f32.mrf.mxu0
    %v346 = vadd.f32 0.0, %v345
    %347 = vmatmul.f32.gmra.mxu0 %v183
    %v348 = vpop.f32.mrf.mxu0
    %v349 = vadd.f32 0.0, %v348
    %350 = vmatmul.f32.gmra.mxu0 %v186
    %v351 = vpop.f32.mrf.mxu0
    %v352 = vadd.f32 0.0, %v351
    %353 = vdwg.mxu0
    %354 = vst [vmem:[#allocation10] sm:$0xff] %v307
    %355 = vst [vmem:[#allocation10 + $0x8] sm:$0xff] %v310
    %356 = vst [vmem:[#allocation10 + $0x10] sm:$0xff] %v313
    %357 = vst [vmem:[#allocation10 + $0x18] sm:$0xff] %v316
    %358 = vst [vmem:[#allocation10 + $0x20] sm:$0xff] %v319
    %359 = vst [vmem:[#allocation10 + $0x28] sm:$0xff] %v322
    %360 = vst [vmem:[#allocation10 + $0x30] sm:$0xff] %v325
    %361 = vst [vmem:[#allocation10 + $0x38] sm:$0xff] %v328
    %362 = vst [vmem:[#allocation10 + $0x40] sm:$0xff] %v331
    %363 = vst [vmem:[#allocation10 + $0x48] sm:$0xff] %v334
    %364 = vst [vmem:[#allocation10 + $0x50] sm:$0xff] %v337
    %365 = vst [vmem:[#allocation10 + $0x58] sm:$0xff] %v340
    %366 = vst [vmem:[#allocation10 + $0x60] sm:$0xff] %v343
    %367 = vst [vmem:[#allocation10 + $0x68] sm:$0xff] %v346
    %368 = vst [vmem:[#allocation10 + $0x70] sm:$0xff] %v349
    %369 = vst [vmem:[#allocation10 + $0x78] sm:$0xff] %v352
    // Predicated region
    $region42: #{tpu_custom_call.1} parent=1 // pred_check
      _
    $region43: #{tpu_custom_call.1} parent=1 // pred_check_branch
      %371 = sbr.rel (0) target = $region45
    $region44: #{tpu_custom_call.1} parent=1 // pred_region
      %373 = vsyncadd [#allocation4], 0
      %s374 = sshll.u32 [#allocation10], 4
      %s375 = int_to_ptr.vmem [resolvable:$true] %s374
      %s376 = sshll.u32 %s6, 4
      %s377 = int_to_ptr.hbm [resolvable:$true] %s376
      %382 = dma.vmem_to_hbm [thread:$0]  %s375, 2048, %s377, [#allocation4], 128, 128, 8
    $region45: #{tpu_custom_call.1} parent=1 // pred_fallthru
      _
    // Predicated region
    $region46: #{tpu_custom_call.1} parent=1 // pred_check
      _
    $region47: #{tpu_custom_call.1} parent=1 // pred_check_branch
      %384 = sbr.rel (0) target = $region49
    $region48: #{tpu_custom_call.1} parent=1 // pred_region
      %386 = dma.done [#allocation4], 2048
    $region49: #{tpu_custom_call.1} parent=1 // pred_fallthru
      _
    %387 = vsyncpa [#allocation3], 1
    %388 = vsyncpa [#allocation6], 1
    %389 = vsyncpa [#allocation9], 1
    %390 = vsyncpa [#allocation4], 1

</llo_original>
